<compile_context>
chip_gen: v5e
topology: v5e:2x2
jax: 0.10.0
libtpu: 0.0.40
codegen_flags: <defaults>
</compile_context>

<pallas_src>
import jax
import jax.numpy as jnp
from jax import lax
from jax.experimental import pallas as pl
from jax.experimental.pallas import tpu as pltpu

# ---- problem sizes (small, consistent with the module) ----
B, S, D = 2, 8, 32          # batch, seq len, d_model ("size")
H = 4                       # attention heads
DK = D // H                 # per-head dim
D_FF = 64                   # feed-forward hidden dim
EPS = 1e-6                  # LayerNorm eps
N = B * S                   # rows after folding batch into sequence
NEG_INF = jnp.float32(-1e9)


def _layernorm_kernel(x, a, b):
    # Matches the module's LayerNorm: mean over last dim; *unbiased* std
    # (divide by D-1); divide by (std + eps). Exact reciprocal (tolerance).
    mean = jnp.mean(x, axis=-1, keepdims=True)
    xc = x - mean
    var = jnp.sum(xc * xc, axis=-1, keepdims=True) * (1.0 / (x.shape[-1] - 1))
    std = jnp.sqrt(var)
    inv = pl.reciprocal(std + EPS, approx=False)
    return a * xc * inv + b


def _layernorm_ref(x, a, b):
    mean = jnp.mean(x, axis=-1, keepdims=True)
    var = jnp.sum((x - mean) ** 2, axis=-1, keepdims=True) / (x.shape[-1] - 1)
    std = jnp.sqrt(var)
    return a * (x - mean) / (std + EPS) + b


def transformer_block_kernel(
    x_ref, bias_ref,
    ln1_a_ref, ln1_b_ref,
    wqkv_ref, bqkv_ref, wo_ref, bo_ref,
    ln2_a_ref, ln2_b_ref,
    w1_ref, b1_ref, w2_ref, b2_ref,
    out_ref,
):
    x = x_ref[...]                                        # (N, D) = (B*S, D)

    # ---------- sublayer 0: x + self_attn(LayerNorm(x)) ----------
    xn = _layernorm_kernel(x, ln1_a_ref[...], ln1_b_ref[...])

    # Single fused Q|K|V projection; 1/sqrt(DK) already folded into the Q
    # columns of wqkv / bqkv by the wrapper.
    qkv = (jnp.dot(xn, wqkv_ref[...], preferred_element_type=jnp.float32)
           + bqkv_ref[...])                               # (N, 3D)

    bias = bias_ref[...]                                  # (N, N) additive mask

    heads = []
    for h in range(H):                                    # static unroll, H=4
        # Static lane slices of the fused projection result (cheap XLU work).
        q = qkv[:, h * DK:(h + 1) * DK]                   # (N, DK)
        k = qkv[:, D + h * DK:D + (h + 1) * DK]           # (N, DK)
        v = qkv[:, 2 * D + h * DK:2 * D + (h + 1) * DK]   # (N, DK)

        # Block-diagonal scores over ALL batch rows at once.
        s = lax.dot_general(q, k, (((1,), (1,)), ((), ())),
                            preferred_element_type=jnp.float32)  # (N, N)
        s = s + bias                                      # mask: single vadd
        s = s - jnp.max(s, axis=-1, keepdims=True)        # stable softmax
        p = jnp.exp(s)
        p = p * pl.reciprocal(jnp.sum(p, axis=-1, keepdims=True), approx=True)
        heads.append(jnp.dot(p, v, preferred_element_type=jnp.float32))  # (N, DK)

    # Fused output projection: lane-concat heads, one (N,D)@(D,D) matmul.
    attn = jnp.concatenate(heads, axis=-1)                # (N, D)
    x1 = (x + jnp.dot(attn, wo_ref[...], preferred_element_type=jnp.float32)
          + bo_ref[...])                                  # dropout == identity

    # ---------- sublayer 1: x1 + feed_forward(LayerNorm(x1)) ----------
    x1n = _layernorm_kernel(x1, ln2_a_ref[...], ln2_b_ref[...])
    hdn = jnp.maximum(
        jnp.dot(x1n, w1_ref[...], preferred_element_type=jnp.float32) + b1_ref[...],
        0.0)
    ff = jnp.dot(hdn, w2_ref[...], preferred_element_type=jnp.float32) + b2_ref[...]
    out_ref[...] = x1 + ff


@jax.jit
def transformer_block(x, mask, params):
    (ln1_a, ln1_b, wq, bq, wk, bk, wv, bv, wo, bo,
     ln2_a, ln2_b, w1, b1, w2, b2) = params

    # ---- layout / constant plumbing (zero kernel cost) ----
    x2d = x.reshape(N, D)

    # Fused QKV slab with 1/sqrt(DK) folded into the Q columns.
    scale = jnp.float32(1.0 / (DK ** 0.5))
    wqkv = jnp.concatenate([wq * scale, wk, wv], axis=1)          # (D, 3D)
    bqkv = jnp.concatenate([bq * scale, bk, bv], axis=0).reshape(1, 3 * D)

    # Block-diagonal additive mask bias over the folded (N, N) score matrix:
    # -1e9 on cross-batch blocks and on masked positions, 0 elsewhere.
    per_batch = jnp.where(mask == 0.0, NEG_INF, jnp.float32(0.0))  # (B, S, S)
    bias = jnp.full((N, N), NEG_INF, jnp.float32)
    for b in range(B):
        bias = bias.at[b * S:(b + 1) * S, b * S:(b + 1) * S].set(per_batch[b])

    # 1-D params -> (1, X) so the kernel never relayouts bias vectors.
    ln1_a2 = ln1_a.reshape(1, D)
    ln1_b2 = ln1_b.reshape(1, D)
    ln2_a2 = ln2_a.reshape(1, D)
    ln2_b2 = ln2_b.reshape(1, D)
    bo2 = bo.reshape(1, D)
    b12 = b1.reshape(1, D_FF)
    b22 = b2.reshape(1, D)

    vmem = pl.BlockSpec(memory_space=pltpu.MemorySpace.VMEM)

    # No grid: single invocation, everything explicitly VMEM-resident.
    out2d = pl.pallas_call(
        transformer_block_kernel,
        out_shape=jax.ShapeDtypeStruct((N, D), jnp.float32),
        in_specs=[vmem] * 14,
        out_specs=vmem,
    )(x2d, bias, ln1_a2, ln1_b2, wqkv, bqkv, wo, bo2,
      ln2_a2, ln2_b2, w1, b12, w2, b22)
    return out2d.reshape(B, S, D)


def transformer_block_ref(x, mask, params):
    """Pure-JAX reference with the module's math, for correctness checking."""
    (ln1_a, ln1_b, wq, bq, wk, bk, wv, bv, wo, bo,
     ln2_a, ln2_b, w1, b1, w2, b2) = params

    def one(xb, mb):
        xn = _layernorm_ref(xb, ln1_a, ln1_b)
        q = xn @ wq + bq
        k = xn @ wk + bk
        v = xn @ wv + bv
        q = q.reshape(S, H, DK).transpose(1, 0, 2)
        k = k.reshape(S, H, DK).transpose(1, 0, 2)
        v = v.reshape(S, H, DK).transpose(1, 0, 2)
        scores = jnp.einsum("hqd,hkd->hqk", q, k) / jnp.sqrt(jnp.float32(DK))
        scores = jnp.where(mb[None] == 0.0, -1e9, scores)
        p = jax.nn.softmax(scores, axis=-1)
        attn = jnp.einsum("hqk,hkd->hqd", p, v).transpose(1, 0, 2).reshape(S, D)
        x1 = xb + (attn @ wo + bo)
        x1n = _layernorm_ref(x1, ln2_a, ln2_b)
        ff = jnp.maximum(x1n @ w1 + b1, 0.0) @ w2 + b2
        return x1 + ff

    return jax.vmap(one)(x, mask)


def make_params(key):
    ks = jax.random.split(key, 8)
    scale = 0.1
    ln1_a = jnp.ones((D,), jnp.float32)
    ln1_b = jnp.zeros((D,), jnp.float32)
    ln2_a = jnp.ones((D,), jnp.float32)
    ln2_b = jnp.zeros((D,), jnp.float32)
    wq = scale * jax.random.normal(ks[0], (D, D), jnp.float32)
    wk = scale * jax.random.normal(ks[1], (D, D), jnp.float32)
    wv = scale * jax.random.normal(ks[2], (D, D), jnp.float32)
    wo = scale * jax.random.normal(ks[3], (D, D), jnp.float32)
    bq = scale * jax.random.normal(ks[4], (D,), jnp.float32)
    bk = jnp.zeros((D,), jnp.float32)
    bv = jnp.zeros((D,), jnp.float32)
    bo = jnp.zeros((D,), jnp.float32)
    w1 = scale * jax.random.normal(ks[5], (D, D_FF), jnp.float32)
    b1 = scale * jax.random.normal(ks[6], (D_FF,), jnp.float32)
    w2 = scale * jax.random.normal(ks[7], (D_FF, D), jnp.float32)
    b2 = jnp.zeros((D,), jnp.float32)
    return (ln1_a, ln1_b, wq, bq, wk, bk, wv, bv, wo, bo,
            ln2_a, ln2_b, w1, b1, w2, b2)


if __name__ == "__main__":
    key = jax.random.PRNGKey(0)
    kx, kp = jax.random.split(key)
    x = jax.random.normal(kx, (B, S, D), jnp.float32)
    # causal mask (lower-triangular), broadcast per batch element; kept as a
    # forward input to preserve the module's (x, mask) signature.
    mask = jnp.tril(jnp.ones((S, S), jnp.float32))
    mask = jnp.broadcast_to(mask, (B, S, S))
    params = make_params(kp)

    out = transformer_block(x, mask, params)
    out = jax.block_until_ready(out)

    ref = transformer_block_ref(x, mask, params)
    assert out.shape == (B, S, D)
    # 1e-3 tolerance accounts for the approx (EUP) reciprocal in the softmax.
    assert jnp.allclose(out, ref, atol=1e-3, rtol=1e-3), "mismatch vs JAX reference"
    print("KERNEL_OK")
</pallas_src>

<mosaic_0001>
module attributes {stable_mosaic.version = 11 : i64} {
  func.func @transformer_block_kernel(%arg0: memref<16x32xf32, #tpu.memory_space<vmem>>, %arg1: memref<16x16xf32, #tpu.memory_space<vmem>>, %arg2: memref<1x32xf32, #tpu.memory_space<vmem>>, %arg3: memref<1x32xf32, #tpu.memory_space<vmem>>, %arg4: memref<32x96xf32, #tpu.memory_space<vmem>>, %arg5: memref<1x96xf32, #tpu.memory_space<vmem>>, %arg6: memref<32x32xf32, #tpu.memory_space<vmem>>, %arg7: memref<1x32xf32, #tpu.memory_space<vmem>>, %arg8: memref<1x32xf32, #tpu.memory_space<vmem>>, %arg9: memref<1x32xf32, #tpu.memory_space<vmem>>, %arg10: memref<32x64xf32, #tpu.memory_space<vmem>>, %arg11: memref<1x64xf32, #tpu.memory_space<vmem>>, %arg12: memref<64x32xf32, #tpu.memory_space<vmem>>, %arg13: memref<1x32xf32, #tpu.memory_space<vmem>>, %arg14: memref<16x32xf32, #tpu.memory_space<vmem>>) attributes {dimension_semantics = [], scalar_prefetch = 0 : i64, scratch_operands = 0 : i64, tpu.core_type = #tpu.core_type<tc>} {
    %c0 = arith.constant 0 : index
    %c0_0 = arith.constant 0 : index
    %0 = vector.load %arg0[%c0, %c0_0] : memref<16x32xf32, #tpu.memory_space<vmem>>, vector<16x32xf32>
    %c0_1 = arith.constant 0 : index
    %c0_2 = arith.constant 0 : index
    %1 = vector.load %arg2[%c0_1, %c0_2] : memref<1x32xf32, #tpu.memory_space<vmem>>, vector<1x32xf32>
    %c0_3 = arith.constant 0 : index
    %c0_4 = arith.constant 0 : index
    %2 = vector.load %arg3[%c0_3, %c0_4] : memref<1x32xf32, #tpu.memory_space<vmem>>, vector<1x32xf32>
    %cst = arith.constant dense<0.000000e+00> : vector<16xf32>
    %3 = vector.multi_reduction <add>, %0, %cst [1] : vector<16x32xf32> to vector<16xf32>
    %4 = vector.shape_cast %3 : vector<16xf32> to vector<16x1xf32>
    %cst_5 = arith.constant 3.200000e+01 : f32
    %5 = vector.broadcast %cst_5 : f32 to vector<16x1xf32>
    %6 = arith.divf %4, %5 : vector<16x1xf32>
    %7 = vector.broadcast %6 : vector<16x1xf32> to vector<16x32xf32>
    %8 = arith.subf %0, %7 : vector<16x32xf32>
    %9 = arith.mulf %8, %8 : vector<16x32xf32>
    %cst_6 = arith.constant dense<0.000000e+00> : vector<16xf32>
    %10 = vector.multi_reduction <add>, %9, %cst_6 [1] : vector<16x32xf32> to vector<16xf32>
    %11 = vector.shape_cast %10 : vector<16xf32> to vector<16x1xf32>
    %cst_7 = arith.constant 0.0322580636 : f32
    %12 = vector.broadcast %cst_7 : f32 to vector<16x1xf32>
    %13 = arith.mulf %11, %12 : vector<16x1xf32>
    %14 = math.sqrt %13 : vector<16x1xf32>
    %cst_8 = arith.constant 9.99999997E-7 : f32
    %15 = vector.broadcast %cst_8 : f32 to vector<16x1xf32>
    %16 = arith.addf %14, %15 : vector<16x1xf32>
    %17 = tpu.reciprocal %16 : vector<16x1xf32> -> vector<16x1xf32>
    %18 = vector.broadcast %1 : vector<1x32xf32> to vector<16x32xf32>
    %19 = arith.mulf %18, %8 : vector<16x32xf32>
    %20 = vector.broadcast %17 : vector<16x1xf32> to vector<16x32xf32>
    %21 = arith.mulf %19, %20 : vector<16x32xf32>
    %22 = vector.broadcast %2 : vector<1x32xf32> to vector<16x32xf32>
    %23 = arith.addf %21, %22 : vector<16x32xf32>
    %c0_9 = arith.constant 0 : index
    %c0_10 = arith.constant 0 : index
    %24 = vector.load %arg4[%c0_9, %c0_10] : memref<32x96xf32, #tpu.memory_space<vmem>>, vector<32x96xf32>
    %cst_11 = arith.constant dense<0.000000e+00> : vector<16x96xf32>
    %25 = tpu.matmul %23, %24, %cst_11 {dimension_numbers = #tpu.dot_dimension_numbers<[1], [0], [0], [1], [0, 0, 1, 1], [], []>} : vector<16x32xf32>, vector<32x96xf32>, vector<16x96xf32> -> vector<16x96xf32>
    %c0_12 = arith.constant 0 : index
    %c0_13 = arith.constant 0 : index
    %26 = vector.load %arg5[%c0_12, %c0_13] : memref<1x96xf32, #tpu.memory_space<vmem>>, vector<1x96xf32>
    %27 = vector.broadcast %26 : vector<1x96xf32> to vector<16x96xf32>
    %28 = arith.addf %25, %27 : vector<16x96xf32>
    %c0_14 = arith.constant 0 : index
    %c0_15 = arith.constant 0 : index
    %29 = vector.load %arg1[%c0_14, %c0_15] : memref<16x16xf32, #tpu.memory_space<vmem>>, vector<16x16xf32>
    %30 = vector.extract_strided_slice %28 {offsets = [0, 0], sizes = [16, 8], strides = [1, 1]} : vector<16x96xf32> to vector<16x8xf32>
    %31 = vector.extract_strided_slice %28 {offsets = [0, 32], sizes = [16, 8], strides = [1, 1]} : vector<16x96xf32> to vector<16x8xf32>
    %32 = vector.extract_strided_slice %28 {offsets = [0, 64], sizes = [16, 8], strides = [1, 1]} : vector<16x96xf32> to vector<16x8xf32>
    %cst_16 = arith.constant dense<0.000000e+00> : vector<16x16xf32>
    %33 = tpu.matmul %30, %31, %cst_16 {dimension_numbers = #tpu.dot_dimension_numbers<[1], [1], [0], [0], [0, 0, 1, 0], [], []>} : vector<16x8xf32>, vector<16x8xf32>, vector<16x16xf32> -> vector<16x16xf32>
    %34 = arith.addf %33, %29 : vector<16x16xf32>
    %cst_17 = arith.constant dense<0xFF800000> : vector<16xf32>
    %35 = vector.multi_reduction <maximumf>, %34, %cst_17 [1] : vector<16x16xf32> to vector<16xf32>
    %36 = vector.shape_cast %35 : vector<16xf32> to vector<16x1xf32>
    %37 = vector.broadcast %36 : vector<16x1xf32> to vector<16x16xf32>
    %38 = arith.subf %34, %37 : vector<16x16xf32>
    %39 = math.exp %38 : vector<16x16xf32>
    %cst_18 = arith.constant dense<0.000000e+00> : vector<16xf32>
    %40 = vector.multi_reduction <add>, %39, %cst_18 [1] : vector<16x16xf32> to vector<16xf32>
    %41 = vector.shape_cast %40 : vector<16xf32> to vector<16x1xf32>
    %42 = tpu.reciprocal %41 {approx = true} : vector<16x1xf32> -> vector<16x1xf32>
    %43 = vector.broadcast %42 : vector<16x1xf32> to vector<16x16xf32>
    %44 = arith.mulf %39, %43 : vector<16x16xf32>
    %cst_19 = arith.constant dense<0.000000e+00> : vector<16x8xf32>
    %45 = tpu.matmul %44, %32, %cst_19 {dimension_numbers = #tpu.dot_dimension_numbers<[1], [0], [0], [1], [0, 0, 1, 1], [], []>} : vector<16x16xf32>, vector<16x8xf32>, vector<16x8xf32> -> vector<16x8xf32>
    %46 = vector.extract_strided_slice %28 {offsets = [0, 8], sizes = [16, 8], strides = [1, 1]} : vector<16x96xf32> to vector<16x8xf32>
    %47 = vector.extract_strided_slice %28 {offsets = [0, 40], sizes = [16, 8], strides = [1, 1]} : vector<16x96xf32> to vector<16x8xf32>
    %48 = vector.extract_strided_slice %28 {offsets = [0, 72], sizes = [16, 8], strides = [1, 1]} : vector<16x96xf32> to vector<16x8xf32>
    %cst_20 = arith.constant dense<0.000000e+00> : vector<16x16xf32>
    %49 = tpu.matmul %46, %47, %cst_20 {dimension_numbers = #tpu.dot_dimension_numbers<[1], [1], [0], [0], [0, 0, 1, 0], [], []>} : vector<16x8xf32>, vector<16x8xf32>, vector<16x16xf32> -> vector<16x16xf32>
    %50 = arith.addf %49, %29 : vector<16x16xf32>
    %cst_21 = arith.constant dense<0xFF800000> : vector<16xf32>
    %51 = vector.multi_reduction <maximumf>, %50, %cst_21 [1] : vector<16x16xf32> to vector<16xf32>
    %52 = vector.shape_cast %51 : vector<16xf32> to vector<16x1xf32>
    %53 = vector.broadcast %52 : vector<16x1xf32> to vector<16x16xf32>
    %54 = arith.subf %50, %53 : vector<16x16xf32>
    %55 = math.exp %54 : vector<16x16xf32>
    %cst_22 = arith.constant dense<0.000000e+00> : vector<16xf32>
    %56 = vector.multi_reduction <add>, %55, %cst_22 [1] : vector<16x16xf32> to vector<16xf32>
    %57 = vector.shape_cast %56 : vector<16xf32> to vector<16x1xf32>
    %58 = tpu.reciprocal %57 {approx = true} : vector<16x1xf32> -> vector<16x1xf32>
    %59 = vector.broadcast %58 : vector<16x1xf32> to vector<16x16xf32>
    %60 = arith.mulf %55, %59 : vector<16x16xf32>
    %cst_23 = arith.constant dense<0.000000e+00> : vector<16x8xf32>
    %61 = tpu.matmul %60, %48, %cst_23 {dimension_numbers = #tpu.dot_dimension_numbers<[1], [0], [0], [1], [0, 0, 1, 1], [], []>} : vector<16x16xf32>, vector<16x8xf32>, vector<16x8xf32> -> vector<16x8xf32>
    %62 = vector.extract_strided_slice %28 {offsets = [0, 16], sizes = [16, 8], strides = [1, 1]} : vector<16x96xf32> to vector<16x8xf32>
    %63 = vector.extract_strided_slice %28 {offsets = [0, 48], sizes = [16, 8], strides = [1, 1]} : vector<16x96xf32> to vector<16x8xf32>
    %64 = vector.extract_strided_slice %28 {offsets = [0, 80], sizes = [16, 8], strides = [1, 1]} : vector<16x96xf32> to vector<16x8xf32>
    %cst_24 = arith.constant dense<0.000000e+00> : vector<16x16xf32>
    %65 = tpu.matmul %62, %63, %cst_24 {dimension_numbers = #tpu.dot_dimension_numbers<[1], [1], [0], [0], [0, 0, 1, 0], [], []>} : vector<16x8xf32>, vector<16x8xf32>, vector<16x16xf32> -> vector<16x16xf32>
    %66 = arith.addf %65, %29 : vector<16x16xf32>
    %cst_25 = arith.constant dense<0xFF800000> : vector<16xf32>
    %67 = vector.multi_reduction <maximumf>, %66, %cst_25 [1] : vector<16x16xf32> to vector<16xf32>
    %68 = vector.shape_cast %67 : vector<16xf32> to vector<16x1xf32>
    %69 = vector.broadcast %68 : vector<16x1xf32> to vector<16x16xf32>
    %70 = arith.subf %66, %69 : vector<16x16xf32>
    %71 = math.exp %70 : vector<16x16xf32>
    %cst_26 = arith.constant dense<0.000000e+00> : vector<16xf32>
    %72 = vector.multi_reduction <add>, %71, %cst_26 [1] : vector<16x16xf32> to vector<16xf32>
    %73 = vector.shape_cast %72 : vector<16xf32> to vector<16x1xf32>
    %74 = tpu.reciprocal %73 {approx = true} : vector<16x1xf32> -> vector<16x1xf32>
    %75 = vector.broadcast %74 : vector<16x1xf32> to vector<16x16xf32>
    %76 = arith.mulf %71, %75 : vector<16x16xf32>
    %cst_27 = arith.constant dense<0.000000e+00> : vector<16x8xf32>
    %77 = tpu.matmul %76, %64, %cst_27 {dimension_numbers = #tpu.dot_dimension_numbers<[1], [0], [0], [1], [0, 0, 1, 1], [], []>} : vector<16x16xf32>, vector<16x8xf32>, vector<16x8xf32> -> vector<16x8xf32>
    %78 = vector.extract_strided_slice %28 {offsets = [0, 24], sizes = [16, 8], strides = [1, 1]} : vector<16x96xf32> to vector<16x8xf32>
    %79 = vector.extract_strided_slice %28 {offsets = [0, 56], sizes = [16, 8], strides = [1, 1]} : vector<16x96xf32> to vector<16x8xf32>
    %80 = vector.extract_strided_slice %28 {offsets = [0, 88], sizes = [16, 8], strides = [1, 1]} : vector<16x96xf32> to vector<16x8xf32>
    %cst_28 = arith.constant dense<0.000000e+00> : vector<16x16xf32>
    %81 = tpu.matmul %78, %79, %cst_28 {dimension_numbers = #tpu.dot_dimension_numbers<[1], [1], [0], [0], [0, 0, 1, 0], [], []>} : vector<16x8xf32>, vector<16x8xf32>, vector<16x16xf32> -> vector<16x16xf32>
    %82 = arith.addf %81, %29 : vector<16x16xf32>
    %cst_29 = arith.constant dense<0xFF800000> : vector<16xf32>
    %83 = vector.multi_reduction <maximumf>, %82, %cst_29 [1] : vector<16x16xf32> to vector<16xf32>
    %84 = vector.shape_cast %83 : vector<16xf32> to vector<16x1xf32>
    %85 = vector.broadcast %84 : vector<16x1xf32> to vector<16x16xf32>
    %86 = arith.subf %82, %85 : vector<16x16xf32>
    %87 = math.exp %86 : vector<16x16xf32>
    %cst_30 = arith.constant dense<0.000000e+00> : vector<16xf32>
    %88 = vector.multi_reduction <add>, %87, %cst_30 [1] : vector<16x16xf32> to vector<16xf32>
    %89 = vector.shape_cast %88 : vector<16xf32> to vector<16x1xf32>
    %90 = tpu.reciprocal %89 {approx = true} : vector<16x1xf32> -> vector<16x1xf32>
    %91 = vector.broadcast %90 : vector<16x1xf32> to vector<16x16xf32>
    %92 = arith.mulf %87, %91 : vector<16x16xf32>
    %cst_31 = arith.constant dense<0.000000e+00> : vector<16x8xf32>
    %93 = tpu.matmul %92, %80, %cst_31 {dimension_numbers = #tpu.dot_dimension_numbers<[1], [0], [0], [1], [0, 0, 1, 1], [], []>} : vector<16x16xf32>, vector<16x8xf32>, vector<16x8xf32> -> vector<16x8xf32>
    %94 = tpu.concatenate %45, %61, %77, %93 in 1 : vector<16x8xf32>, vector<16x8xf32>, vector<16x8xf32>, vector<16x8xf32> -> vector<16x32xf32>
    %c0_32 = arith.constant 0 : index
    %c0_33 = arith.constant 0 : index
    %95 = vector.load %arg6[%c0_32, %c0_33] : memref<32x32xf32, #tpu.memory_space<vmem>>, vector<32x32xf32>
    %cst_34 = arith.constant dense<0.000000e+00> : vector<16x32xf32>
    %96 = tpu.matmul %94, %95, %cst_34 {dimension_numbers = #tpu.dot_dimension_numbers<[1], [0], [0], [1], [0, 0, 1, 1], [], []>} : vector<16x32xf32>, vector<32x32xf32>, vector<16x32xf32> -> vector<16x32xf32>
    %97 = arith.addf %0, %96 : vector<16x32xf32>
    %c0_35 = arith.constant 0 : index
    %c0_36 = arith.constant 0 : index
    %98 = vector.load %arg7[%c0_35, %c0_36] : memref<1x32xf32, #tpu.memory_space<vmem>>, vector<1x32xf32>
    %99 = vector.broadcast %98 : vector<1x32xf32> to vector<16x32xf32>
    %100 = arith.addf %97, %99 : vector<16x32xf32>
    %c0_37 = arith.constant 0 : index
    %c0_38 = arith.constant 0 : index
    %101 = vector.load %arg8[%c0_37, %c0_38] : memref<1x32xf32, #tpu.memory_space<vmem>>, vector<1x32xf32>
    %c0_39 = arith.constant 0 : index
    %c0_40 = arith.constant 0 : index
    %102 = vector.load %arg9[%c0_39, %c0_40] : memref<1x32xf32, #tpu.memory_space<vmem>>, vector<1x32xf32>
    %cst_41 = arith.constant dense<0.000000e+00> : vector<16xf32>
    %103 = vector.multi_reduction <add>, %100, %cst_41 [1] : vector<16x32xf32> to vector<16xf32>
    %104 = vector.shape_cast %103 : vector<16xf32> to vector<16x1xf32>
    %cst_42 = arith.constant 3.200000e+01 : f32
    %105 = vector.broadcast %cst_42 : f32 to vector<16x1xf32>
    %106 = arith.divf %104, %105 : vector<16x1xf32>
    %107 = vector.broadcast %106 : vector<16x1xf32> to vector<16x32xf32>
    %108 = arith.subf %100, %107 : vector<16x32xf32>
    %109 = arith.mulf %108, %108 : vector<16x32xf32>
    %cst_43 = arith.constant dense<0.000000e+00> : vector<16xf32>
    %110 = vector.multi_reduction <add>, %109, %cst_43 [1] : vector<16x32xf32> to vector<16xf32>
    %111 = vector.shape_cast %110 : vector<16xf32> to vector<16x1xf32>
    %cst_44 = arith.constant 0.0322580636 : f32
    %112 = vector.broadcast %cst_44 : f32 to vector<16x1xf32>
    %113 = arith.mulf %111, %112 : vector<16x1xf32>
    %114 = math.sqrt %113 : vector<16x1xf32>
    %cst_45 = arith.constant 9.99999997E-7 : f32
    %115 = vector.broadcast %cst_45 : f32 to vector<16x1xf32>
    %116 = arith.addf %114, %115 : vector<16x1xf32>
    %117 = tpu.reciprocal %116 : vector<16x1xf32> -> vector<16x1xf32>
    %118 = vector.broadcast %101 : vector<1x32xf32> to vector<16x32xf32>
    %119 = arith.mulf %118, %108 : vector<16x32xf32>
    %120 = vector.broadcast %117 : vector<16x1xf32> to vector<16x32xf32>
    %121 = arith.mulf %119, %120 : vector<16x32xf32>
    %122 = vector.broadcast %102 : vector<1x32xf32> to vector<16x32xf32>
    %123 = arith.addf %121, %122 : vector<16x32xf32>
    %c0_46 = arith.constant 0 : index
    %c0_47 = arith.constant 0 : index
    %124 = vector.load %arg10[%c0_46, %c0_47] : memref<32x64xf32, #tpu.memory_space<vmem>>, vector<32x64xf32>
    %cst_48 = arith.constant dense<0.000000e+00> : vector<16x64xf32>
    %125 = tpu.matmul %123, %124, %cst_48 {dimension_numbers = #tpu.dot_dimension_numbers<[1], [0], [0], [1], [0, 0, 1, 1], [], []>} : vector<16x32xf32>, vector<32x64xf32>, vector<16x64xf32> -> vector<16x64xf32>
    %c0_49 = arith.constant 0 : index
    %c0_50 = arith.constant 0 : index
    %126 = vector.load %arg11[%c0_49, %c0_50] : memref<1x64xf32, #tpu.memory_space<vmem>>, vector<1x64xf32>
    %127 = vector.broadcast %126 : vector<1x64xf32> to vector<16x64xf32>
    %128 = arith.addf %125, %127 : vector<16x64xf32>
    %cst_51 = arith.constant 0.000000e+00 : f32
    %129 = vector.broadcast %cst_51 : f32 to vector<16x64xf32>
    %130 = arith.maximumf %128, %129 : vector<16x64xf32>
    %c0_52 = arith.constant 0 : index
    %c0_53 = arith.constant 0 : index
    %131 = vector.load %arg12[%c0_52, %c0_53] : memref<64x32xf32, #tpu.memory_space<vmem>>, vector<64x32xf32>
    %cst_54 = arith.constant dense<0.000000e+00> : vector<16x32xf32>
    %132 = tpu.matmul %130, %131, %cst_54 {dimension_numbers = #tpu.dot_dimension_numbers<[1], [0], [0], [1], [0, 0, 1, 1], [], []>} : vector<16x64xf32>, vector<64x32xf32>, vector<16x32xf32> -> vector<16x32xf32>
    %c0_55 = arith.constant 0 : index
    %c0_56 = arith.constant 0 : index
    %133 = vector.load %arg13[%c0_55, %c0_56] : memref<1x32xf32, #tpu.memory_space<vmem>>, vector<1x32xf32>
    %134 = vector.broadcast %133 : vector<1x32xf32> to vector<16x32xf32>
    %135 = arith.addf %132, %134 : vector<16x32xf32>
    %136 = arith.addf %100, %135 : vector<16x32xf32>
    %c0_57 = arith.constant 0 : index
    %c0_58 = arith.constant 0 : index
    %137 = vector.load %arg14[%c0_57, %c0_58] : memref<16x32xf32, #tpu.memory_space<vmem>>, vector<16x32xf32>
    tpu.vector_store %arg14[%c0_57, %c0_58], %136 {strides = array<i32>} : memref<16x32xf32, #tpu.memory_space<vmem>>, vector<16x32xf32>,
    return
  }
}

</mosaic_0001>

<llo_original>
// kernel: transformer_block.1
$region0: #{transformer_block.1}
  #allocation0 [shape = 'u32[]', space=smem, size = 0x4, offset = 0x4, fixed_abs, tag = 'smem constant byte address 0x4 - core index']
  #allocation1 [shape = 'u32[72,128]{1,0:T(1,128)}', space=vmem, size = 0x9000, scoped, tag = 'internal scratch']
  %s0 = inlined_call_operand.vmem [shape: f32[16,32], index: 0, kind: input, shape index: {}]
  %s1 = inlined_call_operand.vmem [shape: f32[16,16], index: 1, kind: input, shape index: {}]
  %s2 = inlined_call_operand.vmem [shape: f32[1,32], index: 2, kind: input, shape index: {}]
  %s3 = inlined_call_operand.vmem [shape: f32[1,32], index: 3, kind: input, shape index: {}]
  %s4 = inlined_call_operand.vmem [shape: f32[32,96], index: 4, kind: input, shape index: {}]
  %s5 = inlined_call_operand.vmem [shape: f32[1,96], index: 5, kind: input, shape index: {}]
  %s6 = inlined_call_operand.vmem [shape: f32[32,32], index: 6, kind: input, shape index: {}]
  %s7 = inlined_call_operand.vmem [shape: f32[1,32], index: 7, kind: input, shape index: {}]
  %s8 = inlined_call_operand.vmem [shape: f32[1,32], index: 8, kind: input, shape index: {}]
  %s9 = inlined_call_operand.vmem [shape: f32[1,32], index: 9, kind: input, shape index: {}]
  %s10 = inlined_call_operand.vmem [shape: f32[32,64], index: 10, kind: input, shape index: {}]
  %s11 = inlined_call_operand.vmem [shape: f32[1,64], index: 11, kind: input, shape index: {}]
  %s12 = inlined_call_operand.vmem [shape: f32[64,32], index: 12, kind: input, shape index: {}]
  %s13 = inlined_call_operand.vmem [shape: f32[1,32], index: 13, kind: input, shape index: {}]
  %s14 = inlined_call_operand.hbm [shape: f32[16,32], index: 14, kind: output, shape index: {}]
  %s15 = sld [smem:[#allocation0]]
  $region66: #{transformer_block.1} parent=0
    _
  %s17 = ssub.s32 1, %s15
  %s18 = scalar_select 0, %s17, %s15
  $region1: #{transformer_block.1} parent=0
    #allocation2 [shape = 'u8[8192]{0}', space=vmem, size = 0x2000, scoped, tag = 'output window, operand 0, single buffered']
    #allocation3 [shape = 's32[1]{0}', space=sflag, size = 0x4, scoped, tag = 'scoped memory for transformer_block.1']
    %19 = vsyncpa [#allocation3], 0
    // Predicated region
    $region2: #{transformer_block.1} parent=1 // pred_check
      _
    $region3: #{transformer_block.1} parent=1 // pred_check_branch
      %21 = sbr.rel (0) target = $region5
    $region4: #{transformer_block.1} parent=1 // pred_region
      _
    $region5: #{transformer_block.1} parent=1 // pred_fallthru
      _
    // Predicated region
    $region6: #{transformer_block.1} parent=1 // pred_check
      _
    $region7: #{transformer_block.1} parent=1 // pred_check_branch
      %23 = sbr.rel (0) target = $region9
    $region8: #{transformer_block.1} parent=1 // pred_region
      _
    $region9: #{transformer_block.1} parent=1 // pred_fallthru
      _
    // Predicated region
    $region10: #{transformer_block.1} parent=1 // pred_check
      _
    $region11: #{transformer_block.1} parent=1 // pred_check_branch
      %25 = sbr.rel (0) target = $region13
    $region12: #{transformer_block.1} parent=1 // pred_region
      _
    $region13: #{transformer_block.1} parent=1 // pred_fallthru
      _
    // Predicated region
    $region14: #{transformer_block.1} parent=1 // pred_check
      _
    $region15: #{transformer_block.1} parent=1 // pred_check_branch
      %27 = sbr.rel (0) target = $region17
    $region16: #{transformer_block.1} parent=1 // pred_region
      _
    $region17: #{transformer_block.1} parent=1 // pred_fallthru
      _
    // Predicated region
    $region18: #{transformer_block.1} parent=1 // pred_check
      _
    $region19: #{transformer_block.1} parent=1 // pred_check_branch
      %29 = sbr.rel (0) target = $region21
    $region20: #{transformer_block.1} parent=1 // pred_region
      _
    $region21: #{transformer_block.1} parent=1 // pred_fallthru
      _
    // Predicated region
    $region22: #{transformer_block.1} parent=1 // pred_check
      _
    $region23: #{transformer_block.1} parent=1 // pred_check_branch
      %31 = sbr.rel (0) target = $region25
    $region24: #{transformer_block.1} parent=1 // pred_region
      _
    $region25: #{transformer_block.1} parent=1 // pred_fallthru
      _
    // Predicated region
    $region26: #{transformer_block.1} parent=1 // pred_check
      _
    $region27: #{transformer_block.1} parent=1 // pred_check_branch
      %33 = sbr.rel (0) target = $region29
    $region28: #{transformer_block.1} parent=1 // pred_region
      _
    $region29: #{transformer_block.1} parent=1 // pred_fallthru
      _
    // Predicated region
    $region30: #{transformer_block.1} parent=1 // pred_check
      _
    $region31: #{transformer_block.1} parent=1 // pred_check_branch
      %35 = sbr.rel (0) target = $region33
    $region32: #{transformer_block.1} parent=1 // pred_region
      _
    $region33: #{transformer_block.1} parent=1 // pred_fallthru
      _
    // Predicated region
    $region34: #{transformer_block.1} parent=1 // pred_check
      _
    $region35: #{transformer_block.1} parent=1 // pred_check_branch
      %37 = sbr.rel (0) target = $region37
    $region36: #{transformer_block.1} parent=1 // pred_region
      _
    $region37: #{transformer_block.1} parent=1 // pred_fallthru
      _
    // Predicated region
    $region38: #{transformer_block.1} parent=1 // pred_check
      _
    $region39: #{transformer_block.1} parent=1 // pred_check_branch
      %39 = sbr.rel (0) target = $region41
    $region40: #{transformer_block.1} parent=1 // pred_region
      _
    $region41: #{transformer_block.1} parent=1 // pred_fallthru
      _
    // Predicated region
    $region42: #{transformer_block.1} parent=1 // pred_check
      _
    $region43: #{transformer_block.1} parent=1 // pred_check_branch
      %41 = sbr.rel (0) target = $region45
    $region44: #{transformer_block.1} parent=1 // pred_region
      _
    $region45: #{transformer_block.1} parent=1 // pred_fallthru
      _
    // Predicated region
    $region46: #{transformer_block.1} parent=1 // pred_check
      _
    $region47: #{transformer_block.1} parent=1 // pred_check_branch
      %43 = sbr.rel (0) target = $region49
    $region48: #{transformer_block.1} parent=1 // pred_region
      _
    $region49: #{transformer_block.1} parent=1 // pred_fallthru
      _
    // Predicated region
    $region50: #{transformer_block.1} parent=1 // pred_check
      _
    $region51: #{transformer_block.1} parent=1 // pred_check_branch
      %45 = sbr.rel (0) target = $region53
    $region52: #{transformer_block.1} parent=1 // pred_region
      _
    $region53: #{transformer_block.1} parent=1 // pred_fallthru
      _
    // Predicated region
    $region54: #{transformer_block.1} parent=1 // pred_check
      _
    $region55: #{transformer_block.1} parent=1 // pred_check_branch
      %47 = sbr.rel (0) target = $region57
    $region56: #{transformer_block.1} parent=1 // pred_region
      _
    $region57: #{transformer_block.1} parent=1 // pred_fallthru
      _
    %v48 = vld [vmem:[%s0] sm:$0xff]
    %v49 = vld [vmem:[%s0 + $0x8] sm:$0xff]
    %v50 = vld [vmem:[%s2] sm:$0x1]
    %v51 = vld [vmem:[%s3] sm:$0x1]
    %vm52 = vcmask 261120
    %v53 = vsel %vm52, %v48, 0.0
    %54 = vadd.xlane.f32.xlu0 %v53
    %v55 = vpop.xlane.xlu0 %54
    %v56 = vsel %vm52, %v49, 0.0
    %57 = vadd.xlane.f32.xlu0 %v56
    %v58 = vpop.xlane.xlu0 %57
    %v59 = vrcp.pop 32.0
    %v60 = vmul.f32 32.0, %v59
    %v61 = vsub.f32 1.0, %v60
    %v62 = vmul.f32 %v59, %v61
    %v63 = vadd.f32 %v59, %v62
    %vm64 = vweird.f32 %v59
    %v65 = vsel %vm64, %v59, %v63
    %v66 = vmul.f32 %v55, %v65
    %v67 = vmul.f32 %v58, %v65
    %v68 = vsub.f32 %v48, %v66
    %v69 = vsub.f32 %v49, %v67
    %v70 = vmul.f32 %v68, %v68
    %v71 = vmul.f32 %v69, %v69
    %v72 = vsel %vm52, %v70, 0.0
    %73 = vadd.xlane.f32.xlu0 %v72
    %v74 = vpop.xlane.xlu0 %73
    %v75 = vsel %vm52, %v71, 0.0
    %76 = vadd.xlane.f32.xlu0 %v75
    %v77 = vpop.xlane.xlu0 %76
    %v78 = vmul.f32 %v74, 0.032258064
    %v79 = vmul.f32 %v77, 0.032258064
    %v80 = vrsqrt.pop %v78
    %v81 = vmul.f32 %v80, %v78
    %v82 = vmul.f32 %v81, %v80
    %v83 = vmul.f32 0.5, %v82
    %v84 = vsub.f32 1.5, %v83
    %v85 = vmul.f32 %v80, %v84
    %v86 = vmul.f32 %v78, %v85
    %vm87 = vcmp.eq.f32.partialorder %v78, inf
    %v88 = vsel %vm87, %v78, %v86
    %vm89 = vcmp.eq.f32.partialorder %v78, 0.0
    %v90 = vand.u32 %v78, 2147483648
    %v91 = vsel %vm89, %v90, %v88
    %v92 = vrsqrt.pop %v79
    %v93 = vmul.f32 %v92, %v79
    %v94 = vmul.f32 %v93, %v92
    %v95 = vmul.f32 0.5, %v94
    %v96 = vsub.f32 1.5, %v95
    %v97 = vmul.f32 %v92, %v96
    %v98 = vmul.f32 %v79, %v97
    %vm99 = vcmp.eq.f32.partialorder %v79, inf
    %v100 = vsel %vm99, %v79, %v98
    %vm101 = vcmp.eq.f32.partialorder %v79, 0.0
    %v102 = vand.u32 %v79, 2147483648
    %v103 = vsel %vm101, %v102, %v100
    %v104 = vadd.f32 %v91, 1e-06
    %v105 = vadd.f32 %v103, 1e-06
    %v106 = vrcp.pop %v104
    %v107 = vmul.f32 %v104, %v106
    %v108 = vsub.f32 1.0, %v107
    %v109 = vmul.f32 %v106, %v108
    %v110 = vadd.f32 %v106, %v109
    %vm111 = vweird.f32 %v104
    %vm112 = vweird.f32 %v106
    %vm113 = vmor %vm111, %vm112
    %v114 = vsel %vm113, %v106, %v110
    %v115 = vand.u32 2147483647, %v104
    %vm116 = vcmp.eq.f32.partialorder %v115, 8.507059e+37
    %v117 = vand.u32 %v104, 2147483648
    %v118 = vor.u32 1.1754944e-38, %v117
    %v119 = vsel %vm116, %v118, %v114
    %v120 = vrcp.pop %v105
    %v121 = vmul.f32 %v105, %v120
    %v122 = vsub.f32 1.0, %v121
    %v123 = vmul.f32 %v120, %v122
    %v124 = vadd.f32 %v120, %v123
    %vm125 = vweird.f32 %v105
    %vm126 = vweird.f32 %v120
    %vm127 = vmor %vm125, %vm126
    %v128 = vsel %vm127, %v120, %v124
    %v129 = vand.u32 2147483647, %v105
    %vm130 = vcmp.eq.f32.partialorder %v129, 8.507059e+37
    %v131 = vand.u32 %v105, 2147483648
    %v132 = vor.u32 1.1754944e-38, %v131
    %v133 = vsel %vm130, %v132, %v128
    %v135 = vperm.slane %v50, 0
    %v137 = vmul.f32 %v135, %v68
    %v138 = vmul.f32 %v135, %v69
    %v139 = vmul.f32 %v137, %v119
    %v140 = vmul.f32 %v138, %v133
    %v142 = vperm.slane %v51, 0
    %v144 = vadd.f32 %v139, %v142
    %v145 = vadd.f32 %v140, %v142
    %v146 = vld [vmem:[%s4] sm:$0xff]
    %v147 = vld [vmem:[%s4 + $0x8] sm:$0xff]
    %v148 = vld [vmem:[%s4 + $0x10] sm:$0xff]
    %v149 = vld [vmem:[%s4 + $0x18] sm:$0xff]
    %v150 = vld [vmem:[%s5] sm:$0x1]
    %v152 = vperm.slane %v150, 0
    %v155 = vsel %vm52, %v144, 0
    %v158 = vsel %vm52, %v145, 0
    %160 = vmatpush.msra.mxu0 0.0
    %161 = vmatpush.msra.mxu0 0.0
    %162 = vmatpush.msra.mxu0 0.0
    %163 = vmatpush.msra.mxu0 0.0
    %164 = vmatpush.msra.mxu0 0.0
    %165 = vmatpush.msra.mxu0 0.0
    %166 = vmatpush.msra.mxu0 0.0
    %167 = vmatpush.msra.mxu0 0.0
    %168 = vmatpush.msra.mxu0 0.0
    %169 = vmatpush.msra.mxu0 0.0
    %170 = vmatpush.msra.mxu0 0.0
    %171 = vmatpush.msra.mxu0 0.0
    %172 = vmatpush.msra.mxu0 %v149
    %173 = vmatpush.msra.mxu0 %v148
    %174 = vmatpush.msra.mxu0 %v147
    %175 = vmatpush.msra.mxu0 %v146
    %176 = vmatmul.f32.gmra.mxu0 %v155
    %v177 = vpop.f32.mrf.mxu0
    %v178 = vadd.f32 %v152, %v177
    %179 = vmatmul.f32.gmra.mxu0 %v158
    %v180 = vpop.f32.mrf.mxu0
    %v181 = vadd.f32 %v152, %v180
    %182 = vdwg.mxu0
    %v183 = vld [vmem:[%s1] sm:$0xff]
    %v184 = vld [vmem:[%s1 + $0x8] sm:$0xff]
    %187 = vrot.lane.b32.xlu0 %v178, 96
    %v188 = vpop.permute.xlu0 %187
    %189 = vrot.lane.b32.xlu0 %v181, 96
    %v190 = vpop.permute.xlu0 %189
    %vm191 = vcmask 64512
    %v192 = vsel %vm191, %v178, 0
    %v194 = vsel %vm191, %v181, 0
    %v196 = vsel %vm191, %v188, 0
    %v198 = vsel %vm191, %v190, 0
    %200 = vmatpush.xpose.msra.mxu0 0.0
    %201 = vmatpush.xpose.msra.mxu0 0.0
    %202 = vmatpush.xpose.msra.mxu0 0.0
    %203 = vmatpush.xpose.msra.mxu0 0.0
    %204 = vmatpush.xpose.msra.mxu0 0.0
    %205 = vmatpush.xpose.msra.mxu0 0.0
    %206 = vmatpush.xpose.msra.mxu0 0.0
    %207 = vmatpush.xpose.msra.mxu0 0.0
    %208 = vmatpush.xpose.msra.mxu0 0.0
    %209 = vmatpush.xpose.msra.mxu0 0.0
    %210 = vmatpush.xpose.msra.mxu0 0.0
    %211 = vmatpush.xpose.msra.mxu0 0.0
    %212 = vmatpush.xpose.msra.mxu0 0.0
    %213 = vmatpush.xpose.msra.mxu0 0.0
    %214 = vmatpush.xpose.msra.mxu0 %v198
    %215 = vmatpush.xpose.msra.mxu0 %v196
    %216 = vmatmul.f32.gmra.mxu0 %v192
    %v217 = vpop.f32.mrf.mxu0
    %v218 = vadd.f32 %v183, %v217
    %219 = vmatmul.f32.gmra.mxu0 %v194
    %v220 = vpop.f32.mrf.mxu0
    %v221 = vadd.f32 %v184, %v220
    %222 = vdwg.mxu0
    %vm223 = vcmask 130048
    %v224 = vsel %vm223, %v218, -inf
    %225 = vmax.xlane.f32.xlu0 %v224
    %v226 = vpop.xlane.xlu0 %225
    %v227 = vsel %vm223, %v221, -inf
    %228 = vmax.xlane.f32.xlu0 %v227
    %v229 = vpop.xlane.xlu0 %228
    %v230 = vsub.f32 %v218, %v226
    %v231 = vsub.f32 %v221, %v229
    %v232 = vmul.f32 %v230, 1.442695
    %v233 = vpow.pop %v232
    %v234 = vmul.f32 %v231, 1.442695
    %v235 = vpow.pop %v234
    %v236 = vsel %vm223, %v233, 0.0
    %237 = vadd.xlane.f32.xlu0 %v236
    %v238 = vpop.xlane.xlu0 %237
    %v239 = vsel %vm223, %v235, 0.0
    %240 = vadd.xlane.f32.xlu0 %v239
    %v241 = vpop.xlane.xlu0 %240
    %v242 = vrcp.pop %v238
    %v243 = vrcp.pop %v241
    %v244 = vmul.f32 %v233, %v242
    %v245 = vmul.f32 %v235, %v243
    %246 = vrot.lane.b32.xlu0 %v178, 64
    %v247 = vpop.permute.xlu0 %246
    %248 = vrot.lane.b32.xlu0 %v181, 64
    %v249 = vpop.permute.xlu0 %248
    %v253 = vsel %vm223, %v244, 0
    %v256 = vsel %vm223, %v245, 0
    %258 = vmatpush.msra.mxu0 0.0
    %259 = vmatpush.msra.mxu0 0.0
    %260 = vmatpush.msra.mxu0 0.0
    %261 = vmatpush.msra.mxu0 0.0
    %262 = vmatpush.msra.mxu0 0.0
    %263 = vmatpush.msra.mxu0 0.0
    %264 = vmatpush.msra.mxu0 0.0
    %265 = vmatpush.msra.mxu0 0.0
    %266 = vmatpush.msra.mxu0 0.0
    %267 = vmatpush.msra.mxu0 0.0
    %268 = vmatpush.msra.mxu0 0.0
    %269 = vmatpush.msra.mxu0 0.0
    %270 = vmatpush.msra.mxu0 0.0
    %271 = vmatpush.msra.mxu0 0.0
    %272 = vmatpush.msra.mxu0 %v249
    %273 = vmatpush.msra.mxu0 %v247
    %274 = vmatmul.f32.gmra.mxu0 %v253
    %v275 = vpop.f32.mrf.mxu0
    %v276 = vadd.f32 0.0, %v275
    %277 = vmatmul.f32.gmra.mxu0 %v256
    %v278 = vpop.f32.mrf.mxu0
    %v279 = vadd.f32 0.0, %v278
    %280 = vdwg.mxu0
    %281 = vrot.lane.b32.xlu0 %v178, 120
    %v282 = vpop.permute.xlu0 %281
    %283 = vrot.lane.b32.xlu0 %v181, 120
    %v284 = vpop.permute.xlu0 %283
    %285 = vrot.lane.b32.xlu0 %v178, 88
    %v286 = vpop.permute.xlu0 %285
    %287 = vrot.lane.b32.xlu0 %v181, 88
    %v288 = vpop.permute.xlu0 %287
    %v289 = vsel %vm191, %v282, 0
    %v291 = vsel %vm191, %v284, 0
    %v293 = vsel %vm191, %v286, 0
    %v295 = vsel %vm191, %v288, 0
    %297 = vmatpush.xpose.msra.mxu0 0.0
    %298 = vmatpush.xpose.msra.mxu0 0.0
    %299 = vmatpush.xpose.msra.mxu0 0.0
    %300 = vmatpush.xpose.msra.mxu0 0.0
    %301 = vmatpush.xpose.msra.mxu0 0.0
    %302 = vmatpush.xpose.msra.mxu0 0.0
    %303 = vmatpush.xpose.msra.mxu0 0.0
    %304 = vmatpush.xpose.msra.mxu0 0.0
    %305 = vmatpush.xpose.msra.mxu0 0.0
    %306 = vmatpush.xpose.msra.mxu0 0.0
    %307 = vmatpush.xpose.msra.mxu0 0.0
    %308 = vmatpush.xpose.msra.mxu0 0.0
    %309 = vmatpush.xpose.msra.mxu0 0.0
    %310 = vmatpush.xpose.msra.mxu0 0.0
    %311 = vmatpush.xpose.msra.mxu0 %v295
    %312 = vmatpush.xpose.msra.mxu0 %v293
    %313 = vmatmul.f32.gmra.mxu0 %v289
    %v314 = vpop.f32.mrf.mxu0
    %v315 = vadd.f32 %v183, %v314
    %316 = vmatmul.f32.gmra.mxu0 %v291
    %v317 = vpop.f32.mrf.mxu0
    %v318 = vadd.f32 %v184, %v317
    %319 = vdwg.mxu0
    %v320 = vsel %vm223, %v315, -inf
    %321 = vmax.xlane.f32.xlu0 %v320
    %v322 = vpop.xlane.xlu0 %321
    %v323 = vsel %vm223, %v318, -inf
    %324 = vmax.xlane.f32.xlu0 %v323
    %v325 = vpop.xlane.xlu0 %324
    %v326 = vsub.f32 %v315, %v322
    %v327 = vsub.f32 %v318, %v325
    %v328 = vmul.f32 %v326, 1.442695
    %v329 = vpow.pop %v328
    %v330 = vmul.f32 %v327, 1.442695
    %v331 = vpow.pop %v330
    %v332 = vsel %vm223, %v329, 0.0
    %333 = vadd.xlane.f32.xlu0 %v332
    %v334 = vpop.xlane.xlu0 %333
    %v335 = vsel %vm223, %v331, 0.0
    %336 = vadd.xlane.f32.xlu0 %v335
    %v337 = vpop.xlane.xlu0 %336
    %v338 = vrcp.pop %v334
    %v339 = vrcp.pop %v337
    %v340 = vmul.f32 %v329, %v338
    %v341 = vmul.f32 %v331, %v339
    %342 = vrot.lane.b32.xlu0 %v178, 56
    %v343 = vpop.permute.xlu0 %342
    %344 = vrot.lane.b32.xlu0 %v181, 56
    %v345 = vpop.permute.xlu0 %344
    %v349 = vsel %vm223, %v340, 0
    %v352 = vsel %vm223, %v341, 0
    %354 = vmatpush.msra.mxu0 0.0
    %355 = vmatpush.msra.mxu0 0.0
    %356 = vmatpush.msra.mxu0 0.0
    %357 = vmatpush.msra.mxu0 0.0
    %358 = vmatpush.msra.mxu0 0.0
    %359 = vmatpush.msra.mxu0 0.0
    %360 = vmatpush.msra.mxu0 0.0
    %361 = vmatpush.msra.mxu0 0.0
    %362 = vmatpush.msra.mxu0 0.0
    %363 = vmatpush.msra.mxu0 0.0
    %364 = vmatpush.msra.mxu0 0.0
    %365 = vmatpush.msra.mxu0 0.0
    %366 = vmatpush.msra.mxu0 0.0
    %367 = vmatpush.msra.mxu0 0.0
    %368 = vmatpush.msra.mxu0 %v345
    %369 = vmatpush.msra.mxu0 %v343
    %370 = vmatmul.f32.gmra.mxu0 %v349
    %v371 = vpop.f32.mrf.mxu0
    %v372 = vadd.f32 0.0, %v371
    %373 = vmatmul.f32.gmra.mxu0 %v352
    %v374 = vpop.f32.mrf.mxu0
    %v375 = vadd.f32 0.0, %v374
    %376 = vdwg.mxu0
    %377 = vrot.lane.b32.xlu0 %v178, 112
    %v378 = vpop.permute.xlu0 %377
    %379 = vrot.lane.b32.xlu0 %v181, 112
    %v380 = vpop.permute.xlu0 %379
    %381 = vrot.lane.b32.xlu0 %v178, 80
    %v382 = vpop.permute.xlu0 %381
    %383 = vrot.lane.b32.xlu0 %v181, 80
    %v384 = vpop.permute.xlu0 %383
    %v385 = vsel %vm191, %v378, 0
    %v387 = vsel %vm191, %v380, 0
    %v389 = vsel %vm191, %v382, 0
    %v391 = vsel %vm191, %v384, 0
    %393 = vmatpush.xpose.msra.mxu0 0.0
    %394 = vmatpush.xpose.msra.mxu0 0.0
    %395 = vmatpush.xpose.msra.mxu0 0.0
    %396 = vmatpush.xpose.msra.mxu0 0.0
    %397 = vmatpush.xpose.msra.mxu0 0.0
    %398 = vmatpush.xpose.msra.mxu0 0.0
    %399 = vmatpush.xpose.msra.mxu0 0.0
    %400 = vmatpush.xpose.msra.mxu0 0.0
    %401 = vmatpush.xpose.msra.mxu0 0.0
    %402 = vmatpush.xpose.msra.mxu0 0.0
    %403 = vmatpush.xpose.msra.mxu0 0.0
    %404 = vmatpush.xpose.msra.mxu0 0.0
    %405 = vmatpush.xpose.msra.mxu0 0.0
    %406 = vmatpush.xpose.msra.mxu0 0.0
    %407 = vmatpush.xpose.msra.mxu0 %v391
    %408 = vmatpush.xpose.msra.mxu0 %v389
    %409 = vmatmul.f32.gmra.mxu0 %v385
    %v410 = vpop.f32.mrf.mxu0
    %v411 = vadd.f32 %v183, %v410
    %412 = vmatmul.f32.gmra.mxu0 %v387
    %v413 = vpop.f32.mrf.mxu0
    %v414 = vadd.f32 %v184, %v413
    %415 = vdwg.mxu0
    %v416 = vsel %vm223, %v411, -inf
    %417 = vmax.xlane.f32.xlu0 %v416
    %v418 = vpop.xlane.xlu0 %417
    %v419 = vsel %vm223, %v414, -inf
    %420 = vmax.xlane.f32.xlu0 %v419
    %v421 = vpop.xlane.xlu0 %420
    %v422 = vsub.f32 %v411, %v418
    %v423 = vsub.f32 %v414, %v421
    %v424 = vmul.f32 %v422, 1.442695
    %v425 = vpow.pop %v424
    %v426 = vmul.f32 %v423, 1.442695
    %v427 = vpow.pop %v426
    %v428 = vsel %vm223, %v425, 0.0
    %429 = vadd.xlane.f32.xlu0 %v428
    %v430 = vpop.xlane.xlu0 %429
    %v431 = vsel %vm223, %v427, 0.0
    %432 = vadd.xlane.f32.xlu0 %v431
    %v433 = vpop.xlane.xlu0 %432
    %v434 = vrcp.pop %v430
    %v435 = vrcp.pop %v433
    %v436 = vmul.f32 %v425, %v434
    %v437 = vmul.f32 %v427, %v435
    %438 = vrot.lane.b32.xlu0 %v178, 48
    %v439 = vpop.permute.xlu0 %438
    %440 = vrot.lane.b32.xlu0 %v181, 48
    %v441 = vpop.permute.xlu0 %440
    %v445 = vsel %vm223, %v436, 0
    %v448 = vsel %vm223, %v437, 0
    %450 = vmatpush.msra.mxu0 0.0
    %451 = vmatpush.msra.mxu0 0.0
    %452 = vmatpush.msra.mxu0 0.0
    %453 = vmatpush.msra.mxu0 0.0
    %454 = vmatpush.msra.mxu0 0.0
    %455 = vmatpush.msra.mxu0 0.0
    %456 = vmatpush.msra.mxu0 0.0
    %457 = vmatpush.msra.mxu0 0.0
    %458 = vmatpush.msra.mxu0 0.0
    %459 = vmatpush.msra.mxu0 0.0
    %460 = vmatpush.msra.mxu0 0.0
    %461 = vmatpush.msra.mxu0 0.0
    %462 = vmatpush.msra.mxu0 0.0
    %463 = vmatpush.msra.mxu0 0.0
    %464 = vmatpush.msra.mxu0 %v441
    %465 = vmatpush.msra.mxu0 %v439
    %466 = vmatmul.f32.gmra.mxu0 %v445
    %v467 = vpop.f32.mrf.mxu0
    %v468 = vadd.f32 0.0, %v467
    %469 = vmatmul.f32.gmra.mxu0 %v448
    %v470 = vpop.f32.mrf.mxu0
    %v471 = vadd.f32 0.0, %v470
    %472 = vdwg.mxu0
    %473 = vrot.lane.b32.xlu0 %v178, 104
    %v474 = vpop.permute.xlu0 %473
    %475 = vrot.lane.b32.xlu0 %v181, 104
    %v476 = vpop.permute.xlu0 %475
    %477 = vrot.lane.b32.xlu0 %v178, 72
    %v478 = vpop.permute.xlu0 %477
    %479 = vrot.lane.b32.xlu0 %v181, 72
    %v480 = vpop.permute.xlu0 %479
    %v481 = vsel %vm191, %v474, 0
    %v483 = vsel %vm191, %v476, 0
    %v485 = vsel %vm191, %v478, 0
    %v487 = vsel %vm191, %v480, 0
    %489 = vmatpush.xpose.msra.mxu0 0.0
    %490 = vmatpush.xpose.msra.mxu0 0.0
    %491 = vmatpush.xpose.msra.mxu0 0.0
    %492 = vmatpush.xpose.msra.mxu0 0.0
    %493 = vmatpush.xpose.msra.mxu0 0.0
    %494 = vmatpush.xpose.msra.mxu0 0.0
    %495 = vmatpush.xpose.msra.mxu0 0.0
    %496 = vmatpush.xpose.msra.mxu0 0.0
    %497 = vmatpush.xpose.msra.mxu0 0.0
    %498 = vmatpush.xpose.msra.mxu0 0.0
    %499 = vmatpush.xpose.msra.mxu0 0.0
    %500 = vmatpush.xpose.msra.mxu0 0.0
    %501 = vmatpush.xpose.msra.mxu0 0.0
    %502 = vmatpush.xpose.msra.mxu0 0.0
    %503 = vmatpush.xpose.msra.mxu0 %v487
    %504 = vmatpush.xpose.msra.mxu0 %v485
    %505 = vmatmul.f32.gmra.mxu0 %v481
    %v506 = vpop.f32.mrf.mxu0
    %v507 = vadd.f32 %v183, %v506
    %508 = vmatmul.f32.gmra.mxu0 %v483
    %v509 = vpop.f32.mrf.mxu0
    %v510 = vadd.f32 %v184, %v509
    %511 = vdwg.mxu0
    %v512 = vsel %vm223, %v507, -inf
    %513 = vmax.xlane.f32.xlu0 %v512
    %v514 = vpop.xlane.xlu0 %513
    %v515 = vsel %vm223, %v510, -inf
    %516 = vmax.xlane.f32.xlu0 %v515
    %v517 = vpop.xlane.xlu0 %516
    %v518 = vsub.f32 %v507, %v514
    %v519 = vsub.f32 %v510, %v517
    %v520 = vmul.f32 %v518, 1.442695
    %v521 = vpow.pop %v520
    %v522 = vmul.f32 %v519, 1.442695
    %v523 = vpow.pop %v522
    %v524 = vsel %vm223, %v521, 0.0
    %525 = vadd.xlane.f32.xlu0 %v524
    %v526 = vpop.xlane.xlu0 %525
    %v527 = vsel %vm223, %v523, 0.0
    %528 = vadd.xlane.f32.xlu0 %v527
    %v529 = vpop.xlane.xlu0 %528
    %v530 = vrcp.pop %v526
    %v531 = vrcp.pop %v529
    %v532 = vmul.f32 %v521, %v530
    %v533 = vmul.f32 %v523, %v531
    %534 = vrot.lane.b32.xlu0 %v178, 40
    %v535 = vpop.permute.xlu0 %534
    %536 = vrot.lane.b32.xlu0 %v181, 40
    %v537 = vpop.permute.xlu0 %536
    %v541 = vsel %vm223, %v532, 0
    %v544 = vsel %vm223, %v533, 0
    %546 = vmatpush.msra.mxu0 0.0
    %547 = vmatpush.msra.mxu0 0.0
    %548 = vmatpush.msra.mxu0 0.0
    %549 = vmatpush.msra.mxu0 0.0
    %550 = vmatpush.msra.mxu0 0.0
    %551 = vmatpush.msra.mxu0 0.0
    %552 = vmatpush.msra.mxu0 0.0
    %553 = vmatpush.msra.mxu0 0.0
    %554 = vmatpush.msra.mxu0 0.0
    %555 = vmatpush.msra.mxu0 0.0
    %556 = vmatpush.msra.mxu0 0.0
    %557 = vmatpush.msra.mxu0 0.0
    %558 = vmatpush.msra.mxu0 0.0
    %559 = vmatpush.msra.mxu0 0.0
    %560 = vmatpush.msra.mxu0 %v537
    %561 = vmatpush.msra.mxu0 %v535
    %562 = vmatmul.f32.gmra.mxu0 %v541
    %v563 = vpop.f32.mrf.mxu0
    %v564 = vadd.f32 0.0, %v563
    %565 = vmatmul.f32.gmra.mxu0 %v544
    %v566 = vpop.f32.mrf.mxu0
    %v567 = vadd.f32 0.0, %v566
    %568 = vdwg.mxu0
    %571 = vrot.lane.b32.xlu0 %v372, 8
    %v572 = vpop.permute.xlu0 %571
    %573 = vrot.lane.b32.xlu0 %v375, 8
    %v574 = vpop.permute.xlu0 %573
    %579 = vrot.lane.b32.xlu0 %v468, 16
    %v580 = vpop.permute.xlu0 %579
    %581 = vrot.lane.b32.xlu0 %v471, 16
    %v582 = vpop.permute.xlu0 %581
    %587 = vrot.lane.b32.xlu0 %v564, 24
    %v588 = vpop.permute.xlu0 %587
    %589 = vrot.lane.b32.xlu0 %v567, 24
    %v590 = vpop.permute.xlu0 %589
    %v593 = vsel %vm191, %v276, %v572
    %v594 = vsel %vm191, %v279, %v574
    %v595 = vsel %vm223, %v593, %v580
    %v596 = vsel %vm223, %v594, %v582
    %vm597 = vcmask 195584
    %v598 = vsel %vm597, %v595, %v588
    %v599 = vsel %vm597, %v596, %v590
    %v600 = vld [vmem:[%s6] sm:$0xff]
    %v601 = vld [vmem:[%s6 + $0x8] sm:$0xff]
    %v602 = vld [vmem:[%s6 + $0x10] sm:$0xff]
    %v603 = vld [vmem:[%s6 + $0x18] sm:$0xff]
    %v605 = vsel %vm52, %v598, 0
    %v608 = vsel %vm52, %v599, 0
    %610 = vmatpush.msra.mxu0 0.0
    %611 = vmatpush.msra.mxu0 0.0
    %612 = vmatpush.msra.mxu0 0.0
    %613 = vmatpush.msra.mxu0 0.0
    %614 = vmatpush.msra.mxu0 0.0
    %615 = vmatpush.msra.mxu0 0.0
    %616 = vmatpush.msra.mxu0 0.0
    %617 = vmatpush.msra.mxu0 0.0
    %618 = vmatpush.msra.mxu0 0.0
    %619 = vmatpush.msra.mxu0 0.0
    %620 = vmatpush.msra.mxu0 0.0
    %621 = vmatpush.msra.mxu0 0.0
    %622 = vmatpush.msra.mxu0 %v603
    %623 = vmatpush.msra.mxu0 %v602
    %624 = vmatpush.msra.mxu0 %v601
    %625 = vmatpush.msra.mxu0 %v600
    %626 = vmatmul.f32.gmra.mxu0 %v605
    %v627 = vpop.f32.mrf.mxu0
    %v628 = vadd.f32 0.0, %v627
    %629 = vmatmul.f32.gmra.mxu0 %v608
    %v630 = vpop.f32.mrf.mxu0
    %v631 = vadd.f32 0.0, %v630
    %632 = vdwg.mxu0
    %v633 = vadd.f32 %v48, %v628
    %v634 = vadd.f32 %v49, %v631
    %v635 = vld [vmem:[%s7] sm:$0x1]
    %v637 = vperm.slane %v635, 0
    %v639 = vadd.f32 %v633, %v637
    %v640 = vadd.f32 %v634, %v637
    %v641 = vld [vmem:[%s8] sm:$0x1]
    %v642 = vld [vmem:[%s9] sm:$0x1]
    %v643 = vsel %vm52, %v639, 0.0
    %644 = vadd.xlane.f32.xlu0 %v643
    %v645 = vpop.xlane.xlu0 %644
    %v646 = vsel %vm52, %v640, 0.0
    %647 = vadd.xlane.f32.xlu0 %v646
    %v648 = vpop.xlane.xlu0 %647
    %v649 = vmul.f32 %v645, %v65
    %v650 = vmul.f32 %v648, %v65
    %v651 = vsub.f32 %v639, %v649
    %v652 = vsub.f32 %v640, %v650
    %v653 = vmul.f32 %v651, %v651
    %v654 = vmul.f32 %v652, %v652
    %v655 = vsel %vm52, %v653, 0.0
    %656 = vadd.xlane.f32.xlu0 %v655
    %v657 = vpop.xlane.xlu0 %656
    %v658 = vsel %vm52, %v654, 0.0
    %659 = vadd.xlane.f32.xlu0 %v658
    %v660 = vpop.xlane.xlu0 %659
    %v661 = vmul.f32 %v657, 0.032258064
    %v662 = vmul.f32 %v660, 0.032258064
    %v663 = vrsqrt.pop %v661
    %v664 = vmul.f32 %v663, %v661
    %v665 = vmul.f32 %v664, %v663
    %v666 = vmul.f32 0.5, %v665
    %v667 = vsub.f32 1.5, %v666
    %v668 = vmul.f32 %v663, %v667
    %v669 = vmul.f32 %v661, %v668
    %vm670 = vcmp.eq.f32.partialorder %v661, inf
    %v671 = vsel %vm670, %v661, %v669
    %vm672 = vcmp.eq.f32.partialorder %v661, 0.0
    %v673 = vand.u32 %v661, 2147483648
    %v674 = vsel %vm672, %v673, %v671
    %v675 = vrsqrt.pop %v662
    %v676 = vmul.f32 %v675, %v662
    %v677 = vmul.f32 %v676, %v675
    %v678 = vmul.f32 0.5, %v677
    %v679 = vsub.f32 1.5, %v678
    %v680 = vmul.f32 %v675, %v679
    %v681 = vmul.f32 %v662, %v680
    %vm682 = vcmp.eq.f32.partialorder %v662, inf
    %v683 = vsel %vm682, %v662, %v681
    %vm684 = vcmp.eq.f32.partialorder %v662, 0.0
    %v685 = vand.u32 %v662, 2147483648
    %v686 = vsel %vm684, %v685, %v683
    %v687 = vadd.f32 %v674, 1e-06
    %v688 = vadd.f32 %v686, 1e-06
    %v689 = vrcp.pop %v687
    %v690 = vmul.f32 %v687, %v689
    %v691 = vsub.f32 1.0, %v690
    %v692 = vmul.f32 %v689, %v691
    %v693 = vadd.f32 %v689, %v692
    %vm694 = vweird.f32 %v687
    %vm695 = vweird.f32 %v689
    %vm696 = vmor %vm694, %vm695
    %v697 = vsel %vm696, %v689, %v693
    %v698 = vand.u32 2147483647, %v687
    %vm699 = vcmp.eq.f32.partialorder %v698, 8.507059e+37
    %v700 = vand.u32 %v687, 2147483648
    %v701 = vor.u32 1.1754944e-38, %v700
    %v702 = vsel %vm699, %v701, %v697
    %v703 = vrcp.pop %v688
    %v704 = vmul.f32 %v688, %v703
    %v705 = vsub.f32 1.0, %v704
    %v706 = vmul.f32 %v703, %v705
    %v707 = vadd.f32 %v703, %v706
    %vm708 = vweird.f32 %v688
    %vm709 = vweird.f32 %v703
    %vm710 = vmor %vm708, %vm709
    %v711 = vsel %vm710, %v703, %v707
    %v712 = vand.u32 2147483647, %v688
    %vm713 = vcmp.eq.f32.partialorder %v712, 8.507059e+37
    %v714 = vand.u32 %v688, 2147483648
    %v715 = vor.u32 1.1754944e-38, %v714
    %v716 = vsel %vm713, %v715, %v711
    %v718 = vperm.slane %v641, 0
    %v720 = vmul.f32 %v718, %v651
    %v721 = vmul.f32 %v718, %v652
    %v722 = vmul.f32 %v720, %v702
    %v723 = vmul.f32 %v721, %v716
    %v725 = vperm.slane %v642, 0
    %v727 = vadd.f32 %v722, %v725
    %v728 = vadd.f32 %v723, %v725
    %v729 = vld [vmem:[%s10] sm:$0xff]
    %v730 = vld [vmem:[%s10 + $0x8] sm:$0xff]
    %v731 = vld [vmem:[%s10 + $0x10] sm:$0xff]
    %v732 = vld [vmem:[%s10 + $0x18] sm:$0xff]
    %v733 = vld [vmem:[%s11] sm:$0x1]
    %v735 = vperm.slane %v733, 0
    %v738 = vsel %vm52, %v727, 0
    %v741 = vsel %vm52, %v728, 0
    %743 = vmatpush.msra.mxu0 0.0
    %744 = vmatpush.msra.mxu0 0.0
    %745 = vmatpush.msra.mxu0 0.0
    %746 = vmatpush.msra.mxu0 0.0
    %747 = vmatpush.msra.mxu0 0.0
    %748 = vmatpush.msra.mxu0 0.0
    %749 = vmatpush.msra.mxu0 0.0
    %750 = vmatpush.msra.mxu0 0.0
    %751 = vmatpush.msra.mxu0 0.0
    %752 = vmatpush.msra.mxu0 0.0
    %753 = vmatpush.msra.mxu0 0.0
    %754 = vmatpush.msra.mxu0 0.0
    %755 = vmatpush.msra.mxu0 %v732
    %756 = vmatpush.msra.mxu0 %v731
    %757 = vmatpush.msra.mxu0 %v730
    %758 = vmatpush.msra.mxu0 %v729
    %759 = vmatmul.f32.gmra.mxu0 %v738
    %v760 = vpop.f32.mrf.mxu0
    %v761 = vadd.f32 %v735, %v760
    %762 = vmatmul.f32.gmra.mxu0 %v741
    %v763 = vpop.f32.mrf.mxu0
    %v764 = vadd.f32 %v735, %v763
    %765 = vdwg.mxu0
    %v766 = vmax.f32 %v761, 0.0
    %v767 = vmax.f32 %v764, 0.0
    %v768 = vld [vmem:[%s12] sm:$0xff]
    %v769 = vld [vmem:[%s12 + $0x8] sm:$0xff]
    %v770 = vld [vmem:[%s12 + $0x10] sm:$0xff]
    %v771 = vld [vmem:[%s12 + $0x18] sm:$0xff]
    %v772 = vld [vmem:[%s12 + $0x20] sm:$0xff]
    %v773 = vld [vmem:[%s12 + $0x28] sm:$0xff]
    %v774 = vld [vmem:[%s12 + $0x30] sm:$0xff]
    %v775 = vld [vmem:[%s12 + $0x38] sm:$0xff]
    %v776 = vld [vmem:[%s13] sm:$0x1]
    %v778 = vperm.slane %v776, 0
    %vm780 = vcmask 523264
    %v782 = vsel %vm780, %v766, 0
    %v785 = vsel %vm780, %v767, 0
    %787 = vmatpush.msra.mxu0 0.0
    %788 = vmatpush.msra.mxu0 0.0
    %789 = vmatpush.msra.mxu0 0.0
    %790 = vmatpush.msra.mxu0 0.0
    %791 = vmatpush.msra.mxu0 0.0
    %792 = vmatpush.msra.mxu0 0.0
    %793 = vmatpush.msra.mxu0 0.0
    %794 = vmatpush.msra.mxu0 0.0
    %795 = vmatpush.msra.mxu0 %v775
    %796 = vmatpush.msra.mxu0 %v774
    %797 = vmatpush.msra.mxu0 %v773
    %798 = vmatpush.msra.mxu0 %v772
    %799 = vmatpush.msra.mxu0 %v771
    %800 = vmatpush.msra.mxu0 %v770
    %801 = vmatpush.msra.mxu0 %v769
    %802 = vmatpush.msra.mxu0 %v768
    %803 = vmatmul.f32.gmra.mxu0 %v782
    %v804 = vpop.f32.mrf.mxu0
    %v805 = vadd.f32 %v778, %v804
    %806 = vmatmul.f32.gmra.mxu0 %v785
    %v807 = vpop.f32.mrf.mxu0
    %v808 = vadd.f32 %v778, %v807
    %809 = vdwg.mxu0
    %v810 = vadd.f32 %v639, %v805
    %v811 = vadd.f32 %v640, %v808
    %812 = vst.msk [vmem:[#allocation2] sm:$0xff] %vm52, %v810
    %813 = vst.msk [vmem:[#allocation2 + $0x8] sm:$0xff] %vm52, %v811
    // Predicated region
    $region58: #{transformer_block.1} parent=1 // pred_check
      _
    $region59: #{transformer_block.1} parent=1 // pred_check_branch
      %815 = sbr.rel (0) target = $region61
    $region60: #{transformer_block.1} parent=1 // pred_region
      %817 = vsyncadd [#allocation3], 0
      %s818 = sshll.u32 [#allocation2], 4
      %s819 = int_to_ptr.vmem [resolvable:$true] %s818
      %s820 = sshll.u32 %s14, 4
      %s821 = int_to_ptr.hbm [resolvable:$true] %s820
      %826 = dma.vmem_to_hbm [thread:$0]  %s819, 256, %s821, [#allocation3], 128, 128, 8
    $region61: #{transformer_block.1} parent=1 // pred_fallthru
      _
    // Predicated region
    $region62: #{transformer_block.1} parent=1 // pred_check
      _
    $region63: #{transformer_block.1} parent=1 // pred_check_branch
      %828 = sbr.rel (0) target = $region65
    $region64: #{transformer_block.1} parent=1 // pred_region
      %830 = dma.done [#allocation3], 256
    $region65: #{transformer_block.1} parent=1 // pred_fallthru
      _
    %831 = vsyncpa [#allocation3], 1

</llo_original>
